<compile_context>
chip_gen: v7x
topology: tpu7x:2x2x1
jax: 0.10.0
libtpu: 0.0.40
codegen_flags: <defaults>
</compile_context>

<pallas_src>
import math

import jax
import jax.numpy as jnp
from jax.experimental import pallas as pl
from jax.experimental.pallas import tpu as pltpu


def _convgcn_kernel(x_ref, m_ref, bvec_ref, out_ref):
    """Fused ConvGCN forward.

    x_ref:    (B, N*C_in,  S)  VMEM   x in PyTorch-native (node, channel) row order
    m_ref:    (N*C_out, N*C_in) VMEM  kron(adj, conv_w)
    bvec_ref: (N*C_out, 1)     VMEM   rowsum(adj)[i] * conv_b[o], row order (i, o)
    out_ref:  (B, N*C_out, S)  VMEM
    """
    B = x_ref.shape[0]
    m = m_ref[...]                       # (160, 80)
    bvec = bvec_ref[...]                 # (160, 1)
    for b in range(B):                   # B is tiny (2); static unroll
        out_ref[b] = (
            jnp.dot(m, x_ref[b], preferred_element_type=jnp.float32) + bvec
        )


@jax.jit
def conv_gcn_forward(x, adj, conv_w, conv_b):
    """ConvGCN.forward.

    x:      (B, 20, C_in, 14, 14) float32  (matches the torch .view(B*20, C_in, 14, 14))
    adj:    (20, 20) float32
    conv_w: (C_out, C_in) float32          nn.Conv2d weight (C_out, C_in, 1, 1) squeezed
    conv_b: (C_out,) float32               nn.Conv2d bias
    returns (B, 20, C_out*14*14) float32
    """
    B = x.shape[0]
    C_out, C_in = conv_w.shape
    N = 20
    S = x.shape[-2] * x.shape[-1]        # 14 * 14 = 196

    # Free contiguous reshape: rows ordered (node, in_channel).
    x2d = x.reshape(B, N * C_in, S)

    # kron(adj, W)[(i*C_out+o), (j*C_in+c)] = adj[i, j] * W[o, c]      (~51 KB)
    m = jnp.kron(adj, conv_w)                                          # (N*C_out, N*C_in)
    # conv bias propagated exactly through the adjacency matmul: rowsum(adj)[i]*b[o]
    bvec = (jnp.sum(adj, axis=1, keepdims=True) * conv_b[None, :]).reshape(
        N * C_out, 1
    )

    out2d = pl.pallas_call(
        _convgcn_kernel,
        out_shape=jax.ShapeDtypeStruct((B, N * C_out, S), jnp.float32),
        in_specs=[
            pl.BlockSpec(memory_space=pltpu.MemorySpace.VMEM),   # x2d
            pl.BlockSpec(memory_space=pltpu.MemorySpace.VMEM),   # kron(adj, W)
            pl.BlockSpec(memory_space=pltpu.MemorySpace.VMEM),   # bias vector
        ],
        out_specs=pl.BlockSpec(memory_space=pltpu.MemorySpace.VMEM),
    )(x2d, m, bvec)

    # Rows are ordered (node, out_channel); flattening (C_out, S) -> C_out*S is
    # exactly PyTorch's channel-major .view(B, 20, -1): a free contiguous reshape.
    return out2d.reshape(B, N, C_out * S)


if __name__ == "__main__":
    key = jax.random.PRNGKey(0)
    k_x, k_a, k_w, k_b = jax.random.split(key, 4)

    B, NODES, C_IN, C_OUT, HW = 2, 20, 4, 8, 14   # forward hardcodes 20 nodes, 14x14
    S = HW * HW

    x = jax.random.normal(k_x, (B, NODES, C_IN, HW, HW), dtype=jnp.float32)
    adj = jax.random.uniform(k_a, (NODES, NODES), dtype=jnp.float32)

    # nn.Conv2d(C_IN, C_OUT, 1) default init bounds (fan_in = C_IN * 1 * 1).
    bound = 1.0 / math.sqrt(float(C_IN))
    conv_w = jax.random.uniform(k_w, (C_OUT, C_IN), jnp.float32, -bound, bound)
    conv_b = jax.random.uniform(k_b, (C_OUT,), jnp.float32, -bound, bound)

    out = conv_gcn_forward(x, adj, conv_w, conv_b)
    out = jax.block_until_ready(out)
    assert out.shape == (B, NODES, C_OUT * S) and out.dtype == jnp.float32

    # Pure-JAX reference following the literal PyTorch op order (conv -> view -> adj matmul).
    hp = jax.lax.Precision.HIGHEST
    xf = x.reshape(B * NODES, C_IN, S)
    y = jnp.einsum("oc,ncs->nos", conv_w, xf, precision=hp) + conv_b[None, :, None]
    support = y.reshape(B, NODES, C_OUT * S)
    ref = jnp.einsum("ij,bjf->bif", adj, support, precision=hp)
    assert jnp.allclose(out, ref, rtol=1e-2, atol=1e-2)

    print("KERNEL_OK")
</pallas_src>

<mosaic_0001>
module attributes {stable_mosaic.version = 11 : i64} {
  func.func @_convgcn_kernel(%arg0: memref<2x80x196xf32, #tpu.memory_space<vmem>>, %arg1: memref<160x80xf32, #tpu.memory_space<vmem>>, %arg2: memref<160x1xf32, #tpu.memory_space<vmem>>, %arg3: memref<2x160x196xf32, #tpu.memory_space<vmem>>) attributes {dimension_semantics = [], scalar_prefetch = 0 : i64, scratch_operands = 0 : i64, tpu.core_type = #tpu.core_type<tc>} {
    %c0 = arith.constant 0 : index
    %c0_0 = arith.constant 0 : index
    %0 = vector.load %arg1[%c0, %c0_0] : memref<160x80xf32, #tpu.memory_space<vmem>>, vector<160x80xf32>
    %c0_1 = arith.constant 0 : index
    %c0_2 = arith.constant 0 : index
    %1 = vector.load %arg2[%c0_1, %c0_2] : memref<160x1xf32, #tpu.memory_space<vmem>>, vector<160x1xf32>
    %c0_3 = arith.constant 0 : index
    %c0_4 = arith.constant 0 : index
    %c0_5 = arith.constant 0 : index
    %2 = vector.load %arg0[%c0_3, %c0_4, %c0_5] : memref<2x80x196xf32, #tpu.memory_space<vmem>>, vector<1x80x196xf32>
    %3 = vector.shape_cast %2 : vector<1x80x196xf32> to vector<80x196xf32>
    %cst = arith.constant dense<0.000000e+00> : vector<160x196xf32>
    %4 = tpu.matmul %0, %3, %cst {dimension_numbers = #tpu.dot_dimension_numbers<[1], [0], [0], [1], [0, 0, 1, 1], [], []>} : vector<160x80xf32>, vector<80x196xf32>, vector<160x196xf32> -> vector<160x196xf32>
    %5 = vector.broadcast %1 : vector<160x1xf32> to vector<160x196xf32>
    %6 = arith.addf %4, %5 : vector<160x196xf32>
    %c0_6 = arith.constant 0 : index
    %c0_7 = arith.constant 0 : index
    %c0_8 = arith.constant 0 : index
    %7 = vector.load %arg3[%c0_6, %c0_7, %c0_8] : memref<2x160x196xf32, #tpu.memory_space<vmem>>, vector<1x160x196xf32>
    %8 = vector.shape_cast %7 : vector<1x160x196xf32> to vector<160x196xf32>
    %9 = vector.shape_cast %6 : vector<160x196xf32> to vector<1x160x196xf32>
    tpu.vector_store %arg3[%c0_6, %c0_7, %c0_8], %9 {strides = array<i32>} : memref<2x160x196xf32, #tpu.memory_space<vmem>>, vector<1x160x196xf32>,
    %c1 = arith.constant 1 : index
    %c0_9 = arith.constant 0 : index
    %c0_10 = arith.constant 0 : index
    %10 = vector.load %arg0[%c1, %c0_9, %c0_10] : memref<2x80x196xf32, #tpu.memory_space<vmem>>, vector<1x80x196xf32>
    %11 = vector.shape_cast %10 : vector<1x80x196xf32> to vector<80x196xf32>
    %cst_11 = arith.constant dense<0.000000e+00> : vector<160x196xf32>
    %12 = tpu.matmul %0, %11, %cst_11 {dimension_numbers = #tpu.dot_dimension_numbers<[1], [0], [0], [1], [0, 0, 1, 1], [], []>} : vector<160x80xf32>, vector<80x196xf32>, vector<160x196xf32> -> vector<160x196xf32>
    %13 = vector.broadcast %1 : vector<160x1xf32> to vector<160x196xf32>
    %14 = arith.addf %12, %13 : vector<160x196xf32>
    %c1_12 = arith.constant 1 : index
    %c0_13 = arith.constant 0 : index
    %c0_14 = arith.constant 0 : index
    %15 = vector.load %arg3[%c1_12, %c0_13, %c0_14] : memref<2x160x196xf32, #tpu.memory_space<vmem>>, vector<1x160x196xf32>
    %16 = vector.shape_cast %15 : vector<1x160x196xf32> to vector<160x196xf32>
    %17 = vector.shape_cast %14 : vector<160x196xf32> to vector<1x160x196xf32>
    tpu.vector_store %arg3[%c1_12, %c0_13, %c0_14], %17 {strides = array<i32>} : memref<2x160x196xf32, #tpu.memory_space<vmem>>, vector<1x160x196xf32>,
    return
  }
}

</mosaic_0001>

<llo_original>
// kernel: conv_gcn_forward.1
$region0: #{conv_gcn_forward.1}
  #allocation0 [shape = 'u32[]', space=smem, size = 0x4, offset = 0x4, fixed_abs, tag = 'smem constant byte address 0x4 - core index']
  #allocation1 [shape = 'u32[144,128]{1,0:T(1,128)}', space=vmem, size = 0x12000, scoped, tag = 'internal scratch']
  %s0 = inlined_call_operand.vmem [shape: f32[2,80,196], index: 0, kind: input, shape index: {}]
  %s1 = inlined_call_operand.vmem [shape: f32[160,80], index: 1, kind: input, shape index: {}]
  %s2 = inlined_call_operand.vmem [shape: f32[160,1], index: 2, kind: input, shape index: {}]
  %s3 = inlined_call_operand.vmem [shape: f32[2,160,196], index: 3, kind: output, shape index: {}]
  %s4 = sld [smem:[#allocation0]]
  $region22: #{conv_gcn_forward.1} parent=0
    _
  %s6 = ssub.s32 1, %s4
  %s7 = scalar_select 0, %s6, %s4
  // Predicated region
  $region2: #{conv_gcn_forward.1} parent=0 // pred_check
    _
  $region3: #{conv_gcn_forward.1} parent=0 // pred_check_branch
    %9 = sbr.rel (0) target = $region5
  $region4: #{conv_gcn_forward.1} parent=0 // pred_region
    _
  $region5: #{conv_gcn_forward.1} parent=0 // pred_fallthru
    _
  // Predicated region
  $region6: #{conv_gcn_forward.1} parent=0 // pred_check
    _
  $region7: #{conv_gcn_forward.1} parent=0 // pred_check_branch
    %11 = sbr.rel (0) target = $region9
  $region8: #{conv_gcn_forward.1} parent=0 // pred_region
    _
  $region9: #{conv_gcn_forward.1} parent=0 // pred_fallthru
    _
  // Predicated region
  $region10: #{conv_gcn_forward.1} parent=0 // pred_check
    _
  $region11: #{conv_gcn_forward.1} parent=0 // pred_check_branch
    %13 = sbr.rel (0) target = $region13
  $region12: #{conv_gcn_forward.1} parent=0 // pred_region
    _
  $region13: #{conv_gcn_forward.1} parent=0 // pred_fallthru
    _
  %v14 = vld [vmem:[%s1] sm:$0xff]
  %v15 = vld [vmem:[%s1 + $0x8] sm:$0xff]
  %v16 = vld [vmem:[%s1 + $0x10] sm:$0xff]
  %v17 = vld [vmem:[%s1 + $0x18] sm:$0xff]
  %v18 = vld [vmem:[%s1 + $0x20] sm:$0xff]
  %v19 = vld [vmem:[%s1 + $0x28] sm:$0xff]
  %v20 = vld [vmem:[%s1 + $0x30] sm:$0xff]
  %v21 = vld [vmem:[%s1 + $0x38] sm:$0xff]
  %v22 = vld [vmem:[%s1 + $0x40] sm:$0xff]
  %v23 = vld [vmem:[%s1 + $0x48] sm:$0xff]
  %v24 = vld [vmem:[%s1 + $0x50] sm:$0xff]
  %v25 = vld [vmem:[%s1 + $0x58] sm:$0xff]
  %v26 = vld [vmem:[%s1 + $0x60] sm:$0xff]
  %v27 = vld [vmem:[%s1 + $0x68] sm:$0xff]
  %v28 = vld [vmem:[%s1 + $0x70] sm:$0xff]
  %v29 = vld [vmem:[%s1 + $0x78] sm:$0xff]
  %v30 = vld [vmem:[%s1 + $0x80] sm:$0xff]
  %v31 = vld [vmem:[%s1 + $0x88] sm:$0xff]
  %v32 = vld [vmem:[%s1 + $0x90] sm:$0xff]
  %v33 = vld [vmem:[%s1 + $0x98] sm:$0xff]
  %v34 = vld [vmem:[%s2] sm:$0xff]
  %v35 = vld [vmem:[%s2 + $0x8] sm:$0xff]
  %v36 = vld [vmem:[%s2 + $0x10] sm:$0xff]
  %v37 = vld [vmem:[%s2 + $0x18] sm:$0xff]
  %v38 = vld [vmem:[%s2 + $0x20] sm:$0xff]
  %v39 = vld [vmem:[%s2 + $0x28] sm:$0xff]
  %v40 = vld [vmem:[%s2 + $0x30] sm:$0xff]
  %v41 = vld [vmem:[%s2 + $0x38] sm:$0xff]
  %v42 = vld [vmem:[%s2 + $0x40] sm:$0xff]
  %v43 = vld [vmem:[%s2 + $0x48] sm:$0xff]
  %v44 = vld [vmem:[%s2 + $0x50] sm:$0xff]
  %v45 = vld [vmem:[%s2 + $0x58] sm:$0xff]
  %v46 = vld [vmem:[%s2 + $0x60] sm:$0xff]
  %v47 = vld [vmem:[%s2 + $0x68] sm:$0xff]
  %v48 = vld [vmem:[%s2 + $0x70] sm:$0xff]
  %v49 = vld [vmem:[%s2 + $0x78] sm:$0xff]
  %v50 = vld [vmem:[%s2 + $0x80] sm:$0xff]
  %v51 = vld [vmem:[%s2 + $0x88] sm:$0xff]
  %v52 = vld [vmem:[%s2 + $0x90] sm:$0xff]
  %v53 = vld [vmem:[%s2 + $0x98] sm:$0xff]
  %v54 = vld [vmem:[%s0] sm:$0xff]
  %v55 = vld [vmem:[%s0 + $0x8] sm:$0xff]
  %v56 = vld [vmem:[%s0 + $0x10] sm:$0xff]
  %v57 = vld [vmem:[%s0 + $0x18] sm:$0xff]
  %v58 = vld [vmem:[%s0 + $0x20] sm:$0xff]
  %v59 = vld [vmem:[%s0 + $0x28] sm:$0xff]
  %v60 = vld [vmem:[%s0 + $0x30] sm:$0xff]
  %v61 = vld [vmem:[%s0 + $0x38] sm:$0xff]
  %v62 = vld [vmem:[%s0 + $0x40] sm:$0xff]
  %v63 = vld [vmem:[%s0 + $0x48] sm:$0xff]
  %v64 = vld [vmem:[%s0 + $0x50] sm:$0xff]
  %v65 = vld [vmem:[%s0 + $0x58] sm:$0xff]
  %v66 = vld [vmem:[%s0 + $0x60] sm:$0xff]
  %v67 = vld [vmem:[%s0 + $0x68] sm:$0xff]
  %v68 = vld [vmem:[%s0 + $0x70] sm:$0xff]
  %v69 = vld [vmem:[%s0 + $0x78] sm:$0xff]
  %v70 = vld [vmem:[%s0 + $0x80] sm:$0xff]
  %v71 = vld [vmem:[%s0 + $0x88] sm:$0xff]
  %v72 = vld [vmem:[%s0 + $0x90] sm:$0xff]
  %v73 = vld [vmem:[%s0 + $0x98] sm:$0xff]
  %75 = vset.pattern.permute.xlu0 0
  %76 = vperm.xlu0 %75, %v34
  %v77 = vpop.permute.xlu0 %76
  %80 = vset.pattern.permute.xlu0 0
  %81 = vperm.xlu0 %80, %v35
  %v82 = vpop.permute.xlu0 %81
  %85 = vset.pattern.permute.xlu0 0
  %86 = vperm.xlu0 %85, %v36
  %v87 = vpop.permute.xlu0 %86
  %90 = vset.pattern.permute.xlu0 0
  %91 = vperm.xlu0 %90, %v37
  %v92 = vpop.permute.xlu0 %91
  %95 = vset.pattern.permute.xlu0 0
  %96 = vperm.xlu0 %95, %v38
  %v97 = vpop.permute.xlu0 %96
  %100 = vset.pattern.permute.xlu0 0
  %101 = vperm.xlu0 %100, %v39
  %v102 = vpop.permute.xlu0 %101
  %105 = vset.pattern.permute.xlu0 0
  %106 = vperm.xlu0 %105, %v40
  %v107 = vpop.permute.xlu0 %106
  %110 = vset.pattern.permute.xlu0 0
  %111 = vperm.xlu0 %110, %v41
  %v112 = vpop.permute.xlu0 %111
  %115 = vset.pattern.permute.xlu0 0
  %116 = vperm.xlu0 %115, %v42
  %v117 = vpop.permute.xlu0 %116
  %120 = vset.pattern.permute.xlu0 0
  %121 = vperm.xlu0 %120, %v43
  %v122 = vpop.permute.xlu0 %121
  %125 = vset.pattern.permute.xlu0 0
  %126 = vperm.xlu0 %125, %v44
  %v127 = vpop.permute.xlu0 %126
  %130 = vset.pattern.permute.xlu0 0
  %131 = vperm.xlu0 %130, %v45
  %v132 = vpop.permute.xlu0 %131
  %135 = vset.pattern.permute.xlu0 0
  %136 = vperm.xlu0 %135, %v46
  %v137 = vpop.permute.xlu0 %136
  %140 = vset.pattern.permute.xlu0 0
  %141 = vperm.xlu0 %140, %v47
  %v142 = vpop.permute.xlu0 %141
  %145 = vset.pattern.permute.xlu0 0
  %146 = vperm.xlu0 %145, %v48
  %v147 = vpop.permute.xlu0 %146
  %150 = vset.pattern.permute.xlu0 0
  %151 = vperm.xlu0 %150, %v49
  %v152 = vpop.permute.xlu0 %151
  %155 = vset.pattern.permute.xlu0 0
  %156 = vperm.xlu0 %155, %v50
  %v157 = vpop.permute.xlu0 %156
  %160 = vset.pattern.permute.xlu0 0
  %161 = vperm.xlu0 %160, %v51
  %v162 = vpop.permute.xlu0 %161
  %165 = vset.pattern.permute.xlu0 0
  %166 = vperm.xlu0 %165, %v52
  %v167 = vpop.permute.xlu0 %166
  %170 = vset.pattern.permute.xlu0 0
  %171 = vperm.xlu0 %170, %v53
  %v172 = vpop.permute.xlu0 %171
  %vm174 = vcmask 654336
  %v176 = vsel %vm174, %v14, 0
  %v179 = vsel %vm174, %v15, 0
  %v182 = vsel %vm174, %v16, 0
  %v185 = vsel %vm174, %v17, 0
  %v188 = vsel %vm174, %v18, 0
  %v191 = vsel %vm174, %v19, 0
  %v194 = vsel %vm174, %v20, 0
  %v197 = vsel %vm174, %v21, 0
  %v200 = vsel %vm174, %v22, 0
  %v203 = vsel %vm174, %v23, 0
  %v206 = vsel %vm174, %v24, 0
  %v209 = vsel %vm174, %v25, 0
  %v212 = vsel %vm174, %v26, 0
  %v215 = vsel %vm174, %v27, 0
  %v218 = vsel %vm174, %v28, 0
  %v221 = vsel %vm174, %v29, 0
  %v224 = vsel %vm174, %v30, 0
  %v227 = vsel %vm174, %v31, 0
  %v230 = vsel %vm174, %v32, 0
  %v233 = vsel %vm174, %v33, 0
  %235 = vmatprep.subr.mxu0 %v55
  %236 = vmatpush1.msra.mxu0 %v54
  %237 = vmatprep.subr.mxu0 %v57
  %238 = vmatpush1.msra.mxu0 %v56
  %239 = vmatprep.subr.mxu0 %v59
  %240 = vmatpush1.msra.mxu0 %v58
  %241 = vmatprep.subr.mxu0 %v61
  %242 = vmatpush1.msra.mxu0 %v60
  %243 = vmatprep.subr.mxu0 %v63
  %244 = vmatpush1.msra.mxu0 %v62
  %245 = vmatprep.subr.mxu0 %v65
  %246 = vmatpush1.msra.mxu0 %v64
  %247 = vmatprep.subr.mxu0 %v67
  %248 = vmatpush1.msra.mxu0 %v66
  %249 = vmatprep.subr.mxu0 %v69
  %250 = vmatpush1.msra.mxu0 %v68
  %251 = vmatprep.subr.mxu0 %v71
  %252 = vmatpush1.msra.mxu0 %v70
  %253 = vmatprep.subr.mxu0 %v73
  %254 = vmatpush1.msra.mxu0 %v72
  %255 = vmatprep.subr.mxu0 0.0
  %256 = vmatpush1.msra.mxu0 0.0
  %257 = vmatprep.subr.mxu0 0.0
  %258 = vmatpush1.msra.mxu0 0.0
  %259 = vmatprep.subr.mxu0 0.0
  %260 = vmatpush1.msra.mxu0 0.0
  %261 = vmatprep.subr.mxu0 0.0
  %262 = vmatpush1.msra.mxu0 0.0
  %263 = vmatprep.subr.mxu0 0.0
  %264 = vmatpush1.msra.mxu0 0.0
  %265 = vmatprep.subr.mxu0 0.0
  %266 = vmatpush1.msra.mxu0 0.0
  %267 = vmatprep.subr.mxu0 0.0
  %268 = vmatpush1.msra.mxu0 0.0
  %269 = vmatprep.subr.mxu0 0.0
  %270 = vmatpush1.msra.mxu0 0.0
  %271 = vmatprep.subr.mxu0 0.0
  %272 = vmatpush1.msra.mxu0 0.0
  %273 = vmatprep.subr.mxu0 0.0
  %274 = vmatpush1.msra.mxu0 0.0
  %275 = vmatprep.subr.mxu0 0.0
  %276 = vmatpush1.msra.mxu0 0.0
  %277 = vmatprep.subr.mxu0 0.0
  %278 = vmatpush1.msra.mxu0 0.0
  %279 = vmatprep.subr.mxu0 0.0
  %280 = vmatpush1.msra.mxu0 0.0
  %281 = vmatprep.subr.mxu0 0.0
  %282 = vmatpush1.msra.mxu0 0.0
  %283 = vmatprep.subr.mxu0 0.0
  %284 = vmatpush1.msra.mxu0 0.0
  %285 = vmatprep.subr.mxu0 0.0
  %286 = vmatpush1.msra.mxu0 0.0
  %287 = vmatprep.subr.mxu0 0.0
  %288 = vmatpush1.msra.mxu0 0.0
  %289 = vmatprep.subr.mxu0 0.0
  %290 = vmatpush1.msra.mxu0 0.0
  %291 = vmatprep.subr.mxu0 0.0
  %292 = vmatpush1.msra.mxu0 0.0
  %293 = vmatprep.subr.mxu0 0.0
  %294 = vmatpush1.msra.mxu0 0.0
  %295 = vmatprep.subr.mxu0 0.0
  %296 = vmatpush1.msra.mxu0 0.0
  %297 = vmatprep.subr.mxu0 0.0
  %298 = vmatpush1.msra.mxu0 0.0
  %299 = vmatprep.mubr.f32.mxu0 0.0
  %300 = vmatmul.mubr.f32.gmra.mrb[0].mxu0 %v176
  %v301 = vpop.f32.mrb[0].mxu0
  %v302 = vadd.f32 %v77, %v301
  %v303 = vpop.f32.mrb[0].mxu0
  %v304 = vadd.f32 %v77, %v303
  %305 = vmatprep.mubr.f32.mxu0 0.0
  %306 = vmatmul.mubr.f32.gmra.mrb[0].mxu0 %v179
  %v307 = vpop.f32.mrb[0].mxu0
  %v308 = vadd.f32 %v82, %v307
  %v309 = vpop.f32.mrb[0].mxu0
  %v310 = vadd.f32 %v82, %v309
  %311 = vmatprep.mubr.f32.mxu0 0.0
  %312 = vmatmul.mubr.f32.gmra.mrb[0].mxu0 %v182
  %v313 = vpop.f32.mrb[0].mxu0
  %v314 = vadd.f32 %v87, %v313
  %v315 = vpop.f32.mrb[0].mxu0
  %v316 = vadd.f32 %v87, %v315
  %317 = vmatprep.mubr.f32.mxu0 0.0
  %318 = vmatmul.mubr.f32.gmra.mrb[0].mxu0 %v185
  %v319 = vpop.f32.mrb[0].mxu0
  %v320 = vadd.f32 %v92, %v319
  %v321 = vpop.f32.mrb[0].mxu0
  %v322 = vadd.f32 %v92, %v321
  %323 = vmatprep.mubr.f32.mxu0 0.0
  %324 = vmatmul.mubr.f32.gmra.mrb[0].mxu0 %v188
  %v325 = vpop.f32.mrb[0].mxu0
  %v326 = vadd.f32 %v97, %v325
  %v327 = vpop.f32.mrb[0].mxu0
  %v328 = vadd.f32 %v97, %v327
  %329 = vmatprep.mubr.f32.mxu0 0.0
  %330 = vmatmul.mubr.f32.gmra.mrb[0].mxu0 %v191
  %v331 = vpop.f32.mrb[0].mxu0
  %v332 = vadd.f32 %v102, %v331
  %v333 = vpop.f32.mrb[0].mxu0
  %v334 = vadd.f32 %v102, %v333
  %335 = vmatprep.mubr.f32.mxu0 0.0
  %336 = vmatmul.mubr.f32.gmra.mrb[0].mxu0 %v194
  %v337 = vpop.f32.mrb[0].mxu0
  %v338 = vadd.f32 %v107, %v337
  %v339 = vpop.f32.mrb[0].mxu0
  %v340 = vadd.f32 %v107, %v339
  %341 = vmatprep.mubr.f32.mxu0 0.0
  %342 = vmatmul.mubr.f32.gmra.mrb[0].mxu0 %v197
  %v343 = vpop.f32.mrb[0].mxu0
  %v344 = vadd.f32 %v112, %v343
  %v345 = vpop.f32.mrb[0].mxu0
  %v346 = vadd.f32 %v112, %v345
  %347 = vmatprep.mubr.f32.mxu0 0.0
  %348 = vmatmul.mubr.f32.gmra.mrb[0].mxu0 %v200
  %v349 = vpop.f32.mrb[0].mxu0
  %v350 = vadd.f32 %v117, %v349
  %v351 = vpop.f32.mrb[0].mxu0
  %v352 = vadd.f32 %v117, %v351
  %353 = vmatprep.mubr.f32.mxu0 0.0
  %354 = vmatmul.mubr.f32.gmra.mrb[0].mxu0 %v203
  %v355 = vpop.f32.mrb[0].mxu0
  %v356 = vadd.f32 %v122, %v355
  %v357 = vpop.f32.mrb[0].mxu0
  %v358 = vadd.f32 %v122, %v357
  %359 = vmatprep.mubr.f32.mxu0 0.0
  %360 = vmatmul.mubr.f32.gmra.mrb[0].mxu0 %v206
  %v361 = vpop.f32.mrb[0].mxu0
  %v362 = vadd.f32 %v127, %v361
  %v363 = vpop.f32.mrb[0].mxu0
  %v364 = vadd.f32 %v127, %v363
  %365 = vmatprep.mubr.f32.mxu0 0.0
  %366 = vmatmul.mubr.f32.gmra.mrb[0].mxu0 %v209
  %v367 = vpop.f32.mrb[0].mxu0
  %v368 = vadd.f32 %v132, %v367
  %v369 = vpop.f32.mrb[0].mxu0
  %v370 = vadd.f32 %v132, %v369
  %371 = vmatprep.mubr.f32.mxu0 0.0
  %372 = vmatmul.mubr.f32.gmra.mrb[0].mxu0 %v212
  %v373 = vpop.f32.mrb[0].mxu0
  %v374 = vadd.f32 %v137, %v373
  %v375 = vpop.f32.mrb[0].mxu0
  %v376 = vadd.f32 %v137, %v375
  %377 = vmatprep.mubr.f32.mxu0 0.0
  %378 = vmatmul.mubr.f32.gmra.mrb[0].mxu0 %v215
  %v379 = vpop.f32.mrb[0].mxu0
  %v380 = vadd.f32 %v142, %v379
  %v381 = vpop.f32.mrb[0].mxu0
  %v382 = vadd.f32 %v142, %v381
  %383 = vmatprep.mubr.f32.mxu0 0.0
  %384 = vmatmul.mubr.f32.gmra.mrb[0].mxu0 %v218
  %v385 = vpop.f32.mrb[0].mxu0
  %v386 = vadd.f32 %v147, %v385
  %v387 = vpop.f32.mrb[0].mxu0
  %v388 = vadd.f32 %v147, %v387
  %389 = vmatprep.mubr.f32.mxu0 0.0
  %390 = vmatmul.mubr.f32.gmra.mrb[0].mxu0 %v221
  %v391 = vpop.f32.mrb[0].mxu0
  %v392 = vadd.f32 %v152, %v391
  %v393 = vpop.f32.mrb[0].mxu0
  %v394 = vadd.f32 %v152, %v393
  %395 = vmatprep.mubr.f32.mxu0 0.0
  %396 = vmatmul.mubr.f32.gmra.mrb[0].mxu0 %v224
  %v397 = vpop.f32.mrb[0].mxu0
  %v398 = vadd.f32 %v157, %v397
  %v399 = vpop.f32.mrb[0].mxu0
  %v400 = vadd.f32 %v157, %v399
  %401 = vmatprep.mubr.f32.mxu0 0.0
  %402 = vmatmul.mubr.f32.gmra.mrb[0].mxu0 %v227
  %v403 = vpop.f32.mrb[0].mxu0
  %v404 = vadd.f32 %v162, %v403
  %v405 = vpop.f32.mrb[0].mxu0
  %v406 = vadd.f32 %v162, %v405
  %407 = vmatprep.mubr.f32.mxu0 0.0
  %408 = vmatmul.mubr.f32.gmra.mrb[0].mxu0 %v230
  %v409 = vpop.f32.mrb[0].mxu0
  %v410 = vadd.f32 %v167, %v409
  %v411 = vpop.f32.mrb[0].mxu0
  %v412 = vadd.f32 %v167, %v411
  %413 = vmatprep.mubr.f32.mxu0 0.0
  %414 = vmatmul.mubr.f32.gmra.mrb[0].mxu0 %v233
  %v415 = vpop.f32.mrb[0].mxu0
  %v416 = vadd.f32 %v172, %v415
  %v417 = vpop.f32.mrb[0].mxu0
  %v418 = vadd.f32 %v172, %v417
  %419 = vdwg.mxu0
  %420 = vst [vmem:[%s3] sm:$0xff] %v302
  %vm421 = vcmask 556032
  %422 = vst.msk [vmem:[%s3 + $0x8] sm:$0xff] %vm421, %v304
  %423 = vst [vmem:[%s3 + $0x10] sm:$0xff] %v308
  %424 = vst.msk [vmem:[%s3 + $0x18] sm:$0xff] %vm421, %v310
  %425 = vst [vmem:[%s3 + $0x20] sm:$0xff] %v314
  %426 = vst.msk [vmem:[%s3 + $0x28] sm:$0xff] %vm421, %v316
  %427 = vst [vmem:[%s3 + $0x30] sm:$0xff] %v320
  %428 = vst.msk [vmem:[%s3 + $0x38] sm:$0xff] %vm421, %v322
  %429 = vst [vmem:[%s3 + $0x40] sm:$0xff] %v326
  %430 = vst.msk [vmem:[%s3 + $0x48] sm:$0xff] %vm421, %v328
  %431 = vst [vmem:[%s3 + $0x50] sm:$0xff] %v332
  %432 = vst.msk [vmem:[%s3 + $0x58] sm:$0xff] %vm421, %v334
  %433 = vst [vmem:[%s3 + $0x60] sm:$0xff] %v338
  %434 = vst.msk [vmem:[%s3 + $0x68] sm:$0xff] %vm421, %v340
  %435 = vst [vmem:[%s3 + $0x70] sm:$0xff] %v344
  %436 = vst.msk [vmem:[%s3 + $0x78] sm:$0xff] %vm421, %v346
  %437 = vst [vmem:[%s3 + $0x80] sm:$0xff] %v350
  %438 = vst.msk [vmem:[%s3 + $0x88] sm:$0xff] %vm421, %v352
  %439 = vst [vmem:[%s3 + $0x90] sm:$0xff] %v356
  %440 = vst.msk [vmem:[%s3 + $0x98] sm:$0xff] %vm421, %v358
  %441 = vst [vmem:[%s3 + $0xa0] sm:$0xff] %v362
  %442 = vst.msk [vmem:[%s3 + $0xa8] sm:$0xff] %vm421, %v364
  %443 = vst [vmem:[%s3 + $0xb0] sm:$0xff] %v368
  %444 = vst.msk [vmem:[%s3 + $0xb8] sm:$0xff] %vm421, %v370
  %445 = vst [vmem:[%s3 + $0xc0] sm:$0xff] %v374
  %446 = vst.msk [vmem:[%s3 + $0xc8] sm:$0xff] %vm421, %v376
  %447 = vst [vmem:[%s3 + $0xd0] sm:$0xff] %v380
  %448 = vst.msk [vmem:[%s3 + $0xd8] sm:$0xff] %vm421, %v382
  %449 = vst [vmem:[%s3 + $0xe0] sm:$0xff] %v386
  %450 = vst.msk [vmem:[%s3 + $0xe8] sm:$0xff] %vm421, %v388
  %451 = vst [vmem:[%s3 + $0xf0] sm:$0xff] %v392
  %452 = vst.msk [vmem:[%s3 + $0xf8] sm:$0xff] %vm421, %v394
  %453 = vst [vmem:[%s3 + $0x100] sm:$0xff] %v398
  %454 = vst.msk [vmem:[%s3 + $0x108] sm:$0xff] %vm421, %v400
  %455 = vst [vmem:[%s3 + $0x110] sm:$0xff] %v404
  %456 = vst.msk [vmem:[%s3 + $0x118] sm:$0xff] %vm421, %v406
  %457 = vst [vmem:[%s3 + $0x120] sm:$0xff] %v410
  %458 = vst.msk [vmem:[%s3 + $0x128] sm:$0xff] %vm421, %v412
  %459 = vst [vmem:[%s3 + $0x130] sm:$0xff] %v416
  %460 = vst.msk [vmem:[%s3 + $0x138] sm:$0xff] %vm421, %v418
  %s461 = scalar_lea.vmem %s0, 160
  %v462 = vld [vmem:[%s461] sm:$0xff]
  %v463 = vld [vmem:[%s461 + $0x8] sm:$0xff]
  %v464 = vld [vmem:[%s461 + $0x10] sm:$0xff]
  %v465 = vld [vmem:[%s461 + $0x18] sm:$0xff]
  %v466 = vld [vmem:[%s461 + $0x20] sm:$0xff]
  %v467 = vld [vmem:[%s461 + $0x28] sm:$0xff]
  %v468 = vld [vmem:[%s461 + $0x30] sm:$0xff]
  %v469 = vld [vmem:[%s461 + $0x38] sm:$0xff]
  %v470 = vld [vmem:[%s461 + $0x40] sm:$0xff]
  %v471 = vld [vmem:[%s461 + $0x48] sm:$0xff]
  %v472 = vld [vmem:[%s461 + $0x50] sm:$0xff]
  %v473 = vld [vmem:[%s461 + $0x58] sm:$0xff]
  %v474 = vld [vmem:[%s461 + $0x60] sm:$0xff]
  %v475 = vld [vmem:[%s461 + $0x68] sm:$0xff]
  %v476 = vld [vmem:[%s461 + $0x70] sm:$0xff]
  %v477 = vld [vmem:[%s461 + $0x78] sm:$0xff]
  %v478 = vld [vmem:[%s461 + $0x80] sm:$0xff]
  %v479 = vld [vmem:[%s461 + $0x88] sm:$0xff]
  %v480 = vld [vmem:[%s461 + $0x90] sm:$0xff]
  %v481 = vld [vmem:[%s461 + $0x98] sm:$0xff]
  %482 = vmatprep.subr.mxu0 %v463
  %483 = vmatpush1.msra.mxu0 %v462
  %484 = vmatprep.subr.mxu0 %v465
  %485 = vmatpush1.msra.mxu0 %v464
  %486 = vmatprep.subr.mxu0 %v467
  %487 = vmatpush1.msra.mxu0 %v466
  %488 = vmatprep.subr.mxu0 %v469
  %489 = vmatpush1.msra.mxu0 %v468
  %490 = vmatprep.subr.mxu0 %v471
  %491 = vmatpush1.msra.mxu0 %v470
  %492 = vmatprep.subr.mxu0 %v473
  %493 = vmatpush1.msra.mxu0 %v472
  %494 = vmatprep.subr.mxu0 %v475
  %495 = vmatpush1.msra.mxu0 %v474
  %496 = vmatprep.subr.mxu0 %v477
  %497 = vmatpush1.msra.mxu0 %v476
  %498 = vmatprep.subr.mxu0 %v479
  %499 = vmatpush1.msra.mxu0 %v478
  %500 = vmatprep.subr.mxu0 %v481
  %501 = vmatpush1.msra.mxu0 %v480
  %502 = vmatprep.subr.mxu0 0.0
  %503 = vmatpush1.msra.mxu0 0.0
  %504 = vmatprep.subr.mxu0 0.0
  %505 = vmatpush1.msra.mxu0 0.0
  %506 = vmatprep.subr.mxu0 0.0
  %507 = vmatpush1.msra.mxu0 0.0
  %508 = vmatprep.subr.mxu0 0.0
  %509 = vmatpush1.msra.mxu0 0.0
  %510 = vmatprep.subr.mxu0 0.0
  %511 = vmatpush1.msra.mxu0 0.0
  %512 = vmatprep.subr.mxu0 0.0
  %513 = vmatpush1.msra.mxu0 0.0
  %514 = vmatprep.subr.mxu0 0.0
  %515 = vmatpush1.msra.mxu0 0.0
  %516 = vmatprep.subr.mxu0 0.0
  %517 = vmatpush1.msra.mxu0 0.0
  %518 = vmatprep.subr.mxu0 0.0
  %519 = vmatpush1.msra.mxu0 0.0
  %520 = vmatprep.subr.mxu0 0.0
  %521 = vmatpush1.msra.mxu0 0.0
  %522 = vmatprep.subr.mxu0 0.0
  %523 = vmatpush1.msra.mxu0 0.0
  %524 = vmatprep.subr.mxu0 0.0
  %525 = vmatpush1.msra.mxu0 0.0
  %526 = vmatprep.subr.mxu0 0.0
  %527 = vmatpush1.msra.mxu0 0.0
  %528 = vmatprep.subr.mxu0 0.0
  %529 = vmatpush1.msra.mxu0 0.0
  %530 = vmatprep.subr.mxu0 0.0
  %531 = vmatpush1.msra.mxu0 0.0
  %532 = vmatprep.subr.mxu0 0.0
  %533 = vmatpush1.msra.mxu0 0.0
  %534 = vmatprep.subr.mxu0 0.0
  %535 = vmatpush1.msra.mxu0 0.0
  %536 = vmatprep.subr.mxu0 0.0
  %537 = vmatpush1.msra.mxu0 0.0
  %538 = vmatprep.subr.mxu0 0.0
  %539 = vmatpush1.msra.mxu0 0.0
  %540 = vmatprep.subr.mxu0 0.0
  %541 = vmatpush1.msra.mxu0 0.0
  %542 = vmatprep.subr.mxu0 0.0
  %543 = vmatpush1.msra.mxu0 0.0
  %544 = vmatprep.subr.mxu0 0.0
  %545 = vmatpush1.msra.mxu0 0.0
  %546 = vmatprep.mubr.f32.mxu0 0.0
  %547 = vmatmul.mubr.f32.gmra.mrb[0].mxu0 %v176
  %v548 = vpop.f32.mrb[0].mxu0
  %v549 = vadd.f32 %v77, %v548
  %v550 = vpop.f32.mrb[0].mxu0
  %v551 = vadd.f32 %v77, %v550
  %552 = vmatprep.mubr.f32.mxu0 0.0
  %553 = vmatmul.mubr.f32.gmra.mrb[0].mxu0 %v179
  %v554 = vpop.f32.mrb[0].mxu0
  %v555 = vadd.f32 %v82, %v554
  %v556 = vpop.f32.mrb[0].mxu0
  %v557 = vadd.f32 %v82, %v556
  %558 = vmatprep.mubr.f32.mxu0 0.0
  %559 = vmatmul.mubr.f32.gmra.mrb[0].mxu0 %v182
  %v560 = vpop.f32.mrb[0].mxu0
  %v561 = vadd.f32 %v87, %v560
  %v562 = vpop.f32.mrb[0].mxu0
  %v563 = vadd.f32 %v87, %v562
  %564 = vmatprep.mubr.f32.mxu0 0.0
  %565 = vmatmul.mubr.f32.gmra.mrb[0].mxu0 %v185
  %v566 = vpop.f32.mrb[0].mxu0
  %v567 = vadd.f32 %v92, %v566
  %v568 = vpop.f32.mrb[0].mxu0
  %v569 = vadd.f32 %v92, %v568
  %570 = vmatprep.mubr.f32.mxu0 0.0
  %571 = vmatmul.mubr.f32.gmra.mrb[0].mxu0 %v188
  %v572 = vpop.f32.mrb[0].mxu0
  %v573 = vadd.f32 %v97, %v572
  %v574 = vpop.f32.mrb[0].mxu0
  %v575 = vadd.f32 %v97, %v574
  %576 = vmatprep.mubr.f32.mxu0 0.0
  %577 = vmatmul.mubr.f32.gmra.mrb[0].mxu0 %v191
  %v578 = vpop.f32.mrb[0].mxu0
  %v579 = vadd.f32 %v102, %v578
  %v580 = vpop.f32.mrb[0].mxu0
  %v581 = vadd.f32 %v102, %v580
  %582 = vmatprep.mubr.f32.mxu0 0.0
  %583 = vmatmul.mubr.f32.gmra.mrb[0].mxu0 %v194
  %v584 = vpop.f32.mrb[0].mxu0
  %v585 = vadd.f32 %v107, %v584
  %v586 = vpop.f32.mrb[0].mxu0
  %v587 = vadd.f32 %v107, %v586
  %588 = vmatprep.mubr.f32.mxu0 0.0
  %589 = vmatmul.mubr.f32.gmra.mrb[0].mxu0 %v197
  %v590 = vpop.f32.mrb[0].mxu0
  %v591 = vadd.f32 %v112, %v590
  %v592 = vpop.f32.mrb[0].mxu0
  %v593 = vadd.f32 %v112, %v592
  %594 = vmatprep.mubr.f32.mxu0 0.0
  %595 = vmatmul.mubr.f32.gmra.mrb[0].mxu0 %v200
  %v596 = vpop.f32.mrb[0].mxu0
  %v597 = vadd.f32 %v117, %v596
  %v598 = vpop.f32.mrb[0].mxu0
  %v599 = vadd.f32 %v117, %v598
  %600 = vmatprep.mubr.f32.mxu0 0.0
  %601 = vmatmul.mubr.f32.gmra.mrb[0].mxu0 %v203
  %v602 = vpop.f32.mrb[0].mxu0
  %v603 = vadd.f32 %v122, %v602
  %v604 = vpop.f32.mrb[0].mxu0
  %v605 = vadd.f32 %v122, %v604
  %606 = vmatprep.mubr.f32.mxu0 0.0
  %607 = vmatmul.mubr.f32.gmra.mrb[0].mxu0 %v206
  %v608 = vpop.f32.mrb[0].mxu0
  %v609 = vadd.f32 %v127, %v608
  %v610 = vpop.f32.mrb[0].mxu0
  %v611 = vadd.f32 %v127, %v610
  %612 = vmatprep.mubr.f32.mxu0 0.0
  %613 = vmatmul.mubr.f32.gmra.mrb[0].mxu0 %v209
  %v614 = vpop.f32.mrb[0].mxu0
  %v615 = vadd.f32 %v132, %v614
  %v616 = vpop.f32.mrb[0].mxu0
  %v617 = vadd.f32 %v132, %v616
  %618 = vmatprep.mubr.f32.mxu0 0.0
  %619 = vmatmul.mubr.f32.gmra.mrb[0].mxu0 %v212
  %v620 = vpop.f32.mrb[0].mxu0
  %v621 = vadd.f32 %v137, %v620
  %v622 = vpop.f32.mrb[0].mxu0
  %v623 = vadd.f32 %v137, %v622
  %624 = vmatprep.mubr.f32.mxu0 0.0
  %625 = vmatmul.mubr.f32.gmra.mrb[0].mxu0 %v215
  %v626 = vpop.f32.mrb[0].mxu0
  %v627 = vadd.f32 %v142, %v626
  %v628 = vpop.f32.mrb[0].mxu0
  %v629 = vadd.f32 %v142, %v628
  %630 = vmatprep.mubr.f32.mxu0 0.0
  %631 = vmatmul.mubr.f32.gmra.mrb[0].mxu0 %v218
  %v632 = vpop.f32.mrb[0].mxu0
  %v633 = vadd.f32 %v147, %v632
  %v634 = vpop.f32.mrb[0].mxu0
  %v635 = vadd.f32 %v147, %v634
  %636 = vmatprep.mubr.f32.mxu0 0.0
  %637 = vmatmul.mubr.f32.gmra.mrb[0].mxu0 %v221
  %v638 = vpop.f32.mrb[0].mxu0
  %v639 = vadd.f32 %v152, %v638
  %v640 = vpop.f32.mrb[0].mxu0
  %v641 = vadd.f32 %v152, %v640
  %642 = vmatprep.mubr.f32.mxu0 0.0
  %643 = vmatmul.mubr.f32.gmra.mrb[0].mxu0 %v224
  %v644 = vpop.f32.mrb[0].mxu0
  %v645 = vadd.f32 %v157, %v644
  %v646 = vpop.f32.mrb[0].mxu0
  %v647 = vadd.f32 %v157, %v646
  %648 = vmatprep.mubr.f32.mxu0 0.0
  %649 = vmatmul.mubr.f32.gmra.mrb[0].mxu0 %v227
  %v650 = vpop.f32.mrb[0].mxu0
  %v651 = vadd.f32 %v162, %v650
  %v652 = vpop.f32.mrb[0].mxu0
  %v653 = vadd.f32 %v162, %v652
  %654 = vmatprep.mubr.f32.mxu0 0.0
  %655 = vmatmul.mubr.f32.gmra.mrb[0].mxu0 %v230
  %v656 = vpop.f32.mrb[0].mxu0
  %v657 = vadd.f32 %v167, %v656
  %v658 = vpop.f32.mrb[0].mxu0
  %v659 = vadd.f32 %v167, %v658
  %660 = vmatprep.mubr.f32.mxu0 0.0
  %661 = vmatmul.mubr.f32.gmra.mrb[0].mxu0 %v233
  %v662 = vpop.f32.mrb[0].mxu0
  %v663 = vadd.f32 %v172, %v662
  %v664 = vpop.f32.mrb[0].mxu0
  %v665 = vadd.f32 %v172, %v664
  %666 = vdwg.mxu0
  %s667 = scalar_lea.vmem %s3, 320
  %668 = vst [vmem:[%s667] sm:$0xff] %v549
  %669 = vst.msk [vmem:[%s667 + $0x8] sm:$0xff] %vm421, %v551
  %670 = vst [vmem:[%s667 + $0x10] sm:$0xff] %v555
  %671 = vst.msk [vmem:[%s667 + $0x18] sm:$0xff] %vm421, %v557
  %672 = vst [vmem:[%s667 + $0x20] sm:$0xff] %v561
  %673 = vst.msk [vmem:[%s667 + $0x28] sm:$0xff] %vm421, %v563
  %674 = vst [vmem:[%s667 + $0x30] sm:$0xff] %v567
  %675 = vst.msk [vmem:[%s667 + $0x38] sm:$0xff] %vm421, %v569
  %676 = vst [vmem:[%s667 + $0x40] sm:$0xff] %v573
  %677 = vst.msk [vmem:[%s667 + $0x48] sm:$0xff] %vm421, %v575
  %678 = vst [vmem:[%s667 + $0x50] sm:$0xff] %v579
  %679 = vst.msk [vmem:[%s667 + $0x58] sm:$0xff] %vm421, %v581
  %680 = vst [vmem:[%s667 + $0x60] sm:$0xff] %v585
  %681 = vst.msk [vmem:[%s667 + $0x68] sm:$0xff] %vm421, %v587
  %682 = vst [vmem:[%s667 + $0x70] sm:$0xff] %v591
  %683 = vst.msk [vmem:[%s667 + $0x78] sm:$0xff] %vm421, %v593
  %684 = vst [vmem:[%s667 + $0x80] sm:$0xff] %v597
  %685 = vst.msk [vmem:[%s667 + $0x88] sm:$0xff] %vm421, %v599
  %686 = vst [vmem:[%s667 + $0x90] sm:$0xff] %v603
  %687 = vst.msk [vmem:[%s667 + $0x98] sm:$0xff] %vm421, %v605
  %688 = vst [vmem:[%s667 + $0xa0] sm:$0xff] %v609
  %689 = vst.msk [vmem:[%s667 + $0xa8] sm:$0xff] %vm421, %v611
  %690 = vst [vmem:[%s667 + $0xb0] sm:$0xff] %v615
  %691 = vst.msk [vmem:[%s667 + $0xb8] sm:$0xff] %vm421, %v617
  %692 = vst [vmem:[%s667 + $0xc0] sm:$0xff] %v621
  %693 = vst.msk [vmem:[%s667 + $0xc8] sm:$0xff] %vm421, %v623
  %694 = vst [vmem:[%s667 + $0xd0] sm:$0xff] %v627
  %695 = vst.msk [vmem:[%s667 + $0xd8] sm:$0xff] %vm421, %v629
  %696 = vst [vmem:[%s667 + $0xe0] sm:$0xff] %v633
  %697 = vst.msk [vmem:[%s667 + $0xe8] sm:$0xff] %vm421, %v635
  %698 = vst [vmem:[%s667 + $0xf0] sm:$0xff] %v639
  %699 = vst.msk [vmem:[%s667 + $0xf8] sm:$0xff] %vm421, %v641
  %700 = vst [vmem:[%s667 + $0x100] sm:$0xff] %v645
  %701 = vst.msk [vmem:[%s667 + $0x108] sm:$0xff] %vm421, %v647
  %702 = vst [vmem:[%s667 + $0x110] sm:$0xff] %v651
  %703 = vst.msk [vmem:[%s667 + $0x118] sm:$0xff] %vm421, %v653
  %704 = vst [vmem:[%s667 + $0x120] sm:$0xff] %v657
  %705 = vst.msk [vmem:[%s667 + $0x128] sm:$0xff] %vm421, %v659
  %706 = vst [vmem:[%s667 + $0x130] sm:$0xff] %v663
  %707 = vst.msk [vmem:[%s667 + $0x138] sm:$0xff] %vm421, %v665
  // Predicated region
  $region14: #{conv_gcn_forward.1} parent=0 // pred_check
    _
  $region15: #{conv_gcn_forward.1} parent=0 // pred_check_branch
    %709 = sbr.rel (0) target = $region17
  $region16: #{conv_gcn_forward.1} parent=0 // pred_region
    _
  $region17: #{conv_gcn_forward.1} parent=0 // pred_fallthru
    _
  // Predicated region
  $region18: #{conv_gcn_forward.1} parent=0 // pred_check
    _
  $region19: #{conv_gcn_forward.1} parent=0 // pred_check_branch
    %711 = sbr.rel (0) target = $region21
  $region20: #{conv_gcn_forward.1} parent=0 // pred_region
    _
  $region21: #{conv_gcn_forward.1} parent=0 // pred_fallthru
    _

</llo_original>
